<compile_context>
chip_gen: v7x
topology: tpu7x:2x2x1
jax: 0.10.0
libtpu: 0.0.40
codegen_flags: <defaults>
</compile_context>

<pallas_src>
import math

import jax
import jax.numpy as jnp
from jax import lax
from jax.experimental import pallas as pl
from jax.experimental.pallas import tpu as pltpu


def _make_kernel(R, P):
    """R = rows (= D*H*T folded, or H*T when batch-parallel), P = per-head dim."""

    def kernel(lhs_ref, w_ref, b_ref, mask_ref, out_ref):
        lhs = lhs_ref[0]            # (R, 2P)   [task_rows | x_rows], f32 or bf16
        cdt = lhs.dtype             # MXU operand dtype (f32 or bf16)

        # Single fused projection matmul: one MXU call instead of three tiny
        # K=N=P ones.  RHS is block-diagonal so q comes only from task rows and
        # k/v only from x rows.  Accumulate in f32, add f32 bias.
        r = jnp.dot(lhs, w_ref[...], preferred_element_type=jnp.float32)
        r = r + b_ref[...]          # (R, 3P)

        q = r[:, 0 * P:1 * P].astype(cdt)    # 1/sqrt(E) already folded into W_q
        k = r[:, 1 * P:2 * P].astype(cdt)
        v = r[:, 2 * P:3 * P].astype(cdt)

        # All-(batch,head) score matrix in one MXU call (contract last dims,
        # no in-kernel transpose), f32 accumulation.
        s = lax.dot_general(q, k, (((1,), (1,)), ((), ())),
                            preferred_element_type=jnp.float32)       # (R, R)

        # Precomputed additive block-diagonal mask (0 on same (batch, head)
        # group, -1e30 elsewhere): masked entries underflow to exactly 0 in the
        # softmax, so the flat softmax equals per-head softmax bit-for-bit.
        s = s + mask_ref[...]

        # Numerically-stable softmax along the key axis (f32 throughout).
        s = s - jnp.max(s, axis=-1, keepdims=True)
        p = jnp.exp(s)
        denom = jnp.sum(p, axis=-1, keepdims=True)
        # EUP approximate reciprocal + Newton-Raphson refinement: keeps the
        # otherwise-idle EUP slot busy and restores full f32 accuracy for the
        # tight validation check (drop to one/zero NR steps in production).
        inv = pl.reciprocal(denom, approx=True)
        inv = inv * (2.0 - denom * inv)
        inv = inv * (2.0 - denom * inv)
        p = (p * inv).astype(cdt)

        o = jnp.dot(p, v, preferred_element_type=jnp.float32)         # (R, P)
        out_ref[0] = o.astype(out_ref.dtype)

    return kernel


def cross_self_attention(x, task, params, embed_size, heads, *,
                         batch_parallel=False, use_bf16_mxu=False):
    """x, task: (D, T, E) float32.  Returns (D, T, E), matching the PyTorch module.

    batch_parallel=False : fold D into the matmul M dim, single grid step
                           (best for single-TC v5e/v6e at these sizes).
    batch_parallel=True  : keep D as a "parallel" grid axis (v7x: one batch
                           element per TensorCore; benchmark vs folded).
    use_bf16_mxu=True    : bf16 MXU operands, f32 accumulation/softmax.
    """
    D, T, E = x.shape
    assert E == embed_size and embed_size % heads == 0
    P = embed_size // heads
    HT = heads * T

    # Head-split to head-major row layout once in the wrapper:
    # (D, T, E) -> (D, H, T, P) -> (D, H*T, P); rows are (d, h, t) with t fastest.
    x_f = jnp.transpose(x.reshape(D, T, heads, P), (0, 2, 1, 3)).reshape(D, HT, P)
    t_f = jnp.transpose(task.reshape(D, T, heads, P), (0, 2, 1, 3)).reshape(D, HT, P)

    if batch_parallel:
        G, R = D, HT                       # one batch element per grid step / TC
    else:
        G, R = 1, D * HT                   # fold D into M: single grid step
    lhs = jnp.concatenate([t_f, x_f], axis=-1).reshape(G, R, 2 * P)

    # nn.Linear computes y = x @ W^T + b: pre-transpose once, fold the
    # 1/sqrt(E) score scale into the Q weight & bias IN F32, then build the
    # block-diagonal fused projection weight (2P, 3P) and fused bias (1, 3P).
    wq, bq, wk, bk, wv, bv = params
    scale = jnp.float32(1.0 / math.sqrt(embed_size))
    z = jnp.zeros((P, P), jnp.float32)
    w_fused = jnp.block([[wq.T * scale, z,    z   ],
                         [z,            wk.T, wv.T]])                    # (2P, 3P)
    b_fused = jnp.concatenate([bq * scale, bk, bv]).reshape(1, 3 * P)    # (1, 3P)

    if use_bf16_mxu:
        lhs = lhs.astype(jnp.bfloat16)
        w_fused = w_fused.astype(jnp.bfloat16)   # scale folded in f32 above
        # bias / mask / softmax stay f32

    # Precomputed additive mask: rows (d,h,t) grouped by (d,h) = row // T.
    group = jnp.arange(R, dtype=jnp.int32) // T
    mask_bias = jnp.where(group[:, None] == group[None, :],
                          jnp.float32(0.0), jnp.float32(-1e30))          # (R, R)

    kernel = _make_kernel(R, P)

    lhs_spec = pl.BlockSpec((1, R, 2 * P), lambda g: (g, 0, 0))
    w_spec = pl.BlockSpec((2 * P, 3 * P), lambda g: (0, 0))   # constant block
    b_spec = pl.BlockSpec((1, 3 * P), lambda g: (0, 0))       # indices: fetched
    m_spec = pl.BlockSpec((R, R), lambda g: (0, 0))           # once, reused.
    out_spec = pl.BlockSpec((1, R, P), lambda g: (g, 0, 0))

    out_f = pl.pallas_call(
        kernel,
        out_shape=jax.ShapeDtypeStruct((G, R, P), x.dtype),
        grid_spec=pltpu.PrefetchScalarGridSpec(
            num_scalar_prefetch=0,
            grid=(G,),
            in_specs=[lhs_spec, w_spec, b_spec, m_spec],
            out_specs=out_spec,
        ),
        compiler_params=pltpu.CompilerParams(
            dimension_semantics=("parallel",) if batch_parallel else ("arbitrary",)),
    )(lhs, w_fused, b_fused, mask_bias)

    # PyTorch does out.reshape(D, T, H*P) directly on the contiguous (D, H, T, P)
    # result -> raw row-major reshape.  (G, R, P) has exactly those bytes in the
    # same order (for both G=1 and G=D), so this is a zero-cost relabeling.
    return out_f.reshape(D, T, heads * P)


def _reference(x, task, params, embed_size, heads):
    D, T, E = x.shape
    P = embed_size // heads
    wq, bq, wk, bk, wv, bv = params
    xh = x.reshape(D, T, heads, P)
    th = task.reshape(D, T, heads, P)
    q = jnp.einsum('dthp,op->dtho', th, wq) + bq
    k = jnp.einsum('dthp,op->dtho', xh, wk) + bk
    v = jnp.einsum('dthp,op->dtho', xh, wv) + bv
    q = jnp.transpose(q, (0, 2, 1, 3))
    k = jnp.transpose(k, (0, 2, 1, 3))
    v = jnp.transpose(v, (0, 2, 1, 3))
    s = jnp.einsum('dhqp,dhkp->dhqk', q, k) / math.sqrt(embed_size)
    a = jax.nn.softmax(s, axis=-1)
    o = jnp.einsum('dhqk,dhkp->dhqp', a, v)
    # Bug-compatible with the PyTorch module: raw reshape of the head-major
    # contiguous result (no transpose back before the merge).
    return o.reshape(D, T, heads * P)


if __name__ == "__main__":
    embed_size = 32
    heads = 4
    per_dim = embed_size // heads
    D, T = 2, 8

    key = jax.random.PRNGKey(0)
    kx, kt, k1, k2, k3, k4, k5, k6 = jax.random.split(key, 8)

    x = jax.random.normal(kx, (D, T, embed_size), dtype=jnp.float32)
    task = jax.random.normal(kt, (D, T, embed_size), dtype=jnp.float32)

    # deterministic parameter init (nn.Linear-style bound, synthetic values)
    bound = 1.0 / math.sqrt(per_dim)
    wq = jax.random.uniform(k1, (per_dim, per_dim), jnp.float32, -bound, bound)
    bq = jax.random.uniform(k2, (per_dim,), jnp.float32, -bound, bound)
    wk = jax.random.uniform(k3, (per_dim, per_dim), jnp.float32, -bound, bound)
    bk = jax.random.uniform(k4, (per_dim,), jnp.float32, -bound, bound)
    wv = jax.random.uniform(k5, (per_dim, per_dim), jnp.float32, -bound, bound)
    bv = jax.random.uniform(k6, (per_dim,), jnp.float32, -bound, bound)
    params = (wq, bq, wk, bk, wv, bv)

    ref = _reference(x, task, params, embed_size, heads)

    # 1) Default: D folded into M, single grid step, f32 MXU operands
    #    (validation-tight; best structure for single-TC v5e/v6e).
    out = cross_self_attention(x, task, params, embed_size, heads)
    out = jax.block_until_ready(out)
    assert out.shape == (D, T, embed_size)
    assert jnp.allclose(out, ref, atol=1e-5, rtol=1e-5), "f32 folded-D mismatch"

    # 2) bf16 MXU operands (production setting; tolerance relaxed by design).
    out_bf16 = cross_self_attention(x, task, params, embed_size, heads,
                                    use_bf16_mxu=True)
    out_bf16 = jax.block_until_ready(out_bf16)
    assert jnp.allclose(out_bf16, ref, atol=3e-2, rtol=3e-2), "bf16 mismatch"

    # 3) Batch-parallel variant (v7x: one batch element per TensorCore).
    out_bp = cross_self_attention(x, task, params, embed_size, heads,
                                  batch_parallel=True)
    out_bp = jax.block_until_ready(out_bp)
    assert jnp.allclose(out_bp, ref, atol=1e-5, rtol=1e-5), "batch-parallel mismatch"

    print("KERNEL_OK")
</pallas_src>

<mosaic_0001>
module attributes {stable_mosaic.version = 11 : i64} {
  func.func @kernel(%arg0: i32, %arg1: memref<1x64x16xf32, #tpu.memory_space<vmem>>, %arg2: memref<16x24xf32, #tpu.memory_space<vmem>>, %arg3: memref<1x24xf32, #tpu.memory_space<vmem>>, %arg4: memref<64x64xf32, #tpu.memory_space<vmem>>, %arg5: memref<1x64x8xf32, #tpu.memory_space<vmem>>) attributes {dimension_semantics = [#tpu.dimension_semantics<arbitrary>], iteration_bounds = array<i64: 1>, scalar_prefetch = 0 : i64, scratch_operands = 0 : i64, tpu.core_type = #tpu.core_type<tc>, window_params = [{transform_indices = @transform_0, window_bounds = array<i64: 1, 64, 16>}, {pipeline_mode = #tpu.pipeline_mode<synchronous>, transform_indices = @transform_1, window_bounds = array<i64: 16, 24>}, {pipeline_mode = #tpu.pipeline_mode<synchronous>, transform_indices = @transform_2, window_bounds = array<i64: 1, 24>}, {pipeline_mode = #tpu.pipeline_mode<synchronous>, transform_indices = @transform_3, window_bounds = array<i64: 64, 64>}, {transform_indices = @transform_4, window_bounds = array<i64: 1, 64, 8>}]} {
    %c0 = arith.constant 0 : index
    %c0_0 = arith.constant 0 : index
    %c0_1 = arith.constant 0 : index
    %0 = vector.load %arg1[%c0, %c0_0, %c0_1] : memref<1x64x16xf32, #tpu.memory_space<vmem>>, vector<1x64x16xf32>
    %1 = vector.shape_cast %0 : vector<1x64x16xf32> to vector<64x16xf32>
    %c0_2 = arith.constant 0 : index
    %c0_3 = arith.constant 0 : index
    %2 = vector.load %arg2[%c0_2, %c0_3] : memref<16x24xf32, #tpu.memory_space<vmem>>, vector<16x24xf32>
    %cst = arith.constant dense<0.000000e+00> : vector<64x24xf32>
    %3 = tpu.matmul %1, %2, %cst {dimension_numbers = #tpu.dot_dimension_numbers<[1], [0], [0], [1], [0, 0, 1, 1], [], []>} : vector<64x16xf32>, vector<16x24xf32>, vector<64x24xf32> -> vector<64x24xf32>
    %c0_4 = arith.constant 0 : index
    %c0_5 = arith.constant 0 : index
    %4 = vector.load %arg3[%c0_4, %c0_5] : memref<1x24xf32, #tpu.memory_space<vmem>>, vector<1x24xf32>
    %5 = vector.broadcast %4 : vector<1x24xf32> to vector<64x24xf32>
    %6 = arith.addf %3, %5 : vector<64x24xf32>
    %7 = vector.extract_strided_slice %6 {offsets = [0, 0], sizes = [64, 8], strides = [1, 1]} : vector<64x24xf32> to vector<64x8xf32>
    %8 = vector.extract_strided_slice %6 {offsets = [0, 8], sizes = [64, 8], strides = [1, 1]} : vector<64x24xf32> to vector<64x8xf32>
    %9 = vector.extract_strided_slice %6 {offsets = [0, 16], sizes = [64, 8], strides = [1, 1]} : vector<64x24xf32> to vector<64x8xf32>
    %cst_6 = arith.constant dense<0.000000e+00> : vector<64x64xf32>
    %10 = tpu.matmul %7, %8, %cst_6 {dimension_numbers = #tpu.dot_dimension_numbers<[1], [1], [0], [0], [0, 0, 1, 0], [], []>} : vector<64x8xf32>, vector<64x8xf32>, vector<64x64xf32> -> vector<64x64xf32>
    %c0_7 = arith.constant 0 : index
    %c0_8 = arith.constant 0 : index
    %11 = vector.load %arg4[%c0_7, %c0_8] : memref<64x64xf32, #tpu.memory_space<vmem>>, vector<64x64xf32>
    %12 = arith.addf %10, %11 : vector<64x64xf32>
    %cst_9 = arith.constant dense<0xFF800000> : vector<64xf32>
    %13 = vector.multi_reduction <maximumf>, %12, %cst_9 [1] : vector<64x64xf32> to vector<64xf32>
    %14 = vector.shape_cast %13 : vector<64xf32> to vector<64x1xf32>
    %15 = vector.broadcast %14 : vector<64x1xf32> to vector<64x64xf32>
    %16 = arith.subf %12, %15 : vector<64x64xf32>
    %17 = math.exp %16 : vector<64x64xf32>
    %cst_10 = arith.constant dense<0.000000e+00> : vector<64xf32>
    %18 = vector.multi_reduction <add>, %17, %cst_10 [1] : vector<64x64xf32> to vector<64xf32>
    %19 = vector.shape_cast %18 : vector<64xf32> to vector<64x1xf32>
    %20 = tpu.reciprocal %19 {approx = true} : vector<64x1xf32> -> vector<64x1xf32>
    %21 = arith.mulf %19, %20 : vector<64x1xf32>
    %cst_11 = arith.constant 2.000000e+00 : f32
    %22 = vector.broadcast %cst_11 : f32 to vector<64x1xf32>
    %23 = arith.subf %22, %21 : vector<64x1xf32>
    %24 = arith.mulf %20, %23 : vector<64x1xf32>
    %25 = arith.mulf %19, %24 : vector<64x1xf32>
    %cst_12 = arith.constant 2.000000e+00 : f32
    %26 = vector.broadcast %cst_12 : f32 to vector<64x1xf32>
    %27 = arith.subf %26, %25 : vector<64x1xf32>
    %28 = arith.mulf %24, %27 : vector<64x1xf32>
    %29 = vector.broadcast %28 : vector<64x1xf32> to vector<64x64xf32>
    %30 = arith.mulf %17, %29 : vector<64x64xf32>
    %cst_13 = arith.constant dense<0.000000e+00> : vector<64x8xf32>
    %31 = tpu.matmul %30, %9, %cst_13 {dimension_numbers = #tpu.dot_dimension_numbers<[1], [0], [0], [1], [0, 0, 1, 1], [], []>} : vector<64x64xf32>, vector<64x8xf32>, vector<64x8xf32> -> vector<64x8xf32>
    %c0_14 = arith.constant 0 : index
    %c0_15 = arith.constant 0 : index
    %c0_16 = arith.constant 0 : index
    %32 = vector.load %arg5[%c0_14, %c0_15, %c0_16] : memref<1x64x8xf32, #tpu.memory_space<vmem>>, vector<1x64x8xf32>
    %33 = vector.shape_cast %32 : vector<1x64x8xf32> to vector<64x8xf32>
    %34 = vector.shape_cast %31 : vector<64x8xf32> to vector<1x64x8xf32>
    tpu.vector_store %arg5[%c0_14, %c0_15, %c0_16], %34 {strides = array<i32>} : memref<1x64x8xf32, #tpu.memory_space<vmem>>, vector<1x64x8xf32>,
    return
  }
  func.func @transform_0(%arg0: i32) -> (i32, i32, i32) {
    %c0_i32 = arith.constant 0 : i32
    %c0_i32_0 = arith.constant 0 : i32
    %c0_i32_1 = arith.constant 0 : i32
    return %arg0, %c0_i32, %c0_i32_0 : i32, i32, i32
  }
  func.func @transform_1(%arg0: i32) -> (i32, i32) {
    %c0_i32 = arith.constant 0 : i32
    %c0_i32_0 = arith.constant 0 : i32
    %c0_i32_1 = arith.constant 0 : i32
    return %c0_i32, %c0_i32_0 : i32, i32
  }
  func.func @transform_2(%arg0: i32) -> (i32, i32) {
    %c0_i32 = arith.constant 0 : i32
    %c0_i32_0 = arith.constant 0 : i32
    %c0_i32_1 = arith.constant 0 : i32
    return %c0_i32, %c0_i32_0 : i32, i32
  }
  func.func @transform_3(%arg0: i32) -> (i32, i32) {
    %c0_i32 = arith.constant 0 : i32
    %c0_i32_0 = arith.constant 0 : i32
    %c0_i32_1 = arith.constant 0 : i32
    return %c0_i32, %c0_i32_0 : i32, i32
  }
  func.func @transform_4(%arg0: i32) -> (i32, i32, i32) {
    %c0_i32 = arith.constant 0 : i32
    %c0_i32_0 = arith.constant 0 : i32
    %c0_i32_1 = arith.constant 0 : i32
    return %arg0, %c0_i32, %c0_i32_0 : i32, i32, i32
  }
}

</mosaic_0001>

<llo_original>
// kernel: tpu_custom_call.1
$region0: #{tpu_custom_call.1}
  #allocation0 [shape = 'u32[]', space=smem, size = 0x4, offset = 0x4, fixed_abs, tag = 'smem constant byte address 0x4 - core index']
  #allocation1 [shape = 'u32[144,128]{1,0:T(1,128)}', space=vmem, size = 0x12000, scoped, tag = 'internal scratch']
  %s0 = inlined_call_operand.vmem [shape: f32[1,64,16], index: 0, kind: input, shape index: {}]
  %s1 = inlined_call_operand.vmem [shape: f32[16,24], index: 1, kind: input, shape index: {}]
  %s2 = inlined_call_operand.vmem [shape: f32[1,24], index: 2, kind: input, shape index: {}]
  %s3 = inlined_call_operand.vmem [shape: f32[64,64], index: 3, kind: input, shape index: {}]
  %s4 = inlined_call_operand.vmem [shape: f32[1,64,8], index: 4, kind: output, shape index: {}]
  %s5 = sld [smem:[#allocation0]]
  $region26: #{tpu_custom_call.1} parent=0
    _
  %s7 = ssub.s32 1, %s5
  %s8 = scalar_select 0, %s7, %s5
  // Predicated region
  $region2: #{tpu_custom_call.1} parent=0 // pred_check
    _
  $region3: #{tpu_custom_call.1} parent=0 // pred_check_branch
    %10 = sbr.rel (0) target = $region5
  $region4: #{tpu_custom_call.1} parent=0 // pred_region
    _
  $region5: #{tpu_custom_call.1} parent=0 // pred_fallthru
    _
  // Predicated region
  $region6: #{tpu_custom_call.1} parent=0 // pred_check
    _
  $region7: #{tpu_custom_call.1} parent=0 // pred_check_branch
    %12 = sbr.rel (0) target = $region9
  $region8: #{tpu_custom_call.1} parent=0 // pred_region
    _
  $region9: #{tpu_custom_call.1} parent=0 // pred_fallthru
    _
  // Predicated region
  $region10: #{tpu_custom_call.1} parent=0 // pred_check
    _
  $region11: #{tpu_custom_call.1} parent=0 // pred_check_branch
    %14 = sbr.rel (0) target = $region13
  $region12: #{tpu_custom_call.1} parent=0 // pred_region
    _
  $region13: #{tpu_custom_call.1} parent=0 // pred_fallthru
    _
  // Predicated region
  $region14: #{tpu_custom_call.1} parent=0 // pred_check
    _
  $region15: #{tpu_custom_call.1} parent=0 // pred_check_branch
    %16 = sbr.rel (0) target = $region17
  $region16: #{tpu_custom_call.1} parent=0 // pred_region
    _
  $region17: #{tpu_custom_call.1} parent=0 // pred_fallthru
    _
  %v17 = vld [vmem:[%s0] sm:$0xff]
  %v18 = vld [vmem:[%s0 + $0x8] sm:$0xff]
  %v19 = vld [vmem:[%s0 + $0x10] sm:$0xff]
  %v20 = vld [vmem:[%s0 + $0x18] sm:$0xff]
  %v21 = vld [vmem:[%s0 + $0x20] sm:$0xff]
  %v22 = vld [vmem:[%s0 + $0x28] sm:$0xff]
  %v23 = vld [vmem:[%s0 + $0x30] sm:$0xff]
  %v24 = vld [vmem:[%s0 + $0x38] sm:$0xff]
  %v25 = vld [vmem:[%s1] sm:$0xff]
  %v26 = vld [vmem:[%s1 + $0x8] sm:$0xff]
  %v27 = vld [vmem:[%s2] sm:$0x1]
  %v29 = vlaneseq
  %v30 = vshrl.u32 %v29, 7
  %v31 = vsub.s32 0, %v30
  %v32 = vrot.slane %v27, %v31
  %vm34 = vcmask 130048
  %v36 = vsel %vm34, %v17, 0
  %v39 = vsel %vm34, %v18, 0
  %v42 = vsel %vm34, %v19, 0
  %v45 = vsel %vm34, %v20, 0
  %v48 = vsel %vm34, %v21, 0
  %v51 = vsel %vm34, %v22, 0
  %v54 = vsel %vm34, %v23, 0
  %v57 = vsel %vm34, %v24, 0
  %59 = vmatprep.subr.mxu0 0.0
  %60 = vmatpush1.msra.mxu0 %v25
  %61 = vmatprep.subr.mxu0 0.0
  %62 = vmatpush1.msra.mxu0 %v26
  %63 = vmatprep.subr.mxu0 0.0
  %64 = vmatpush1.msra.mxu0 0.0
  %65 = vmatprep.subr.mxu0 0.0
  %66 = vmatpush1.msra.mxu0 0.0
  %67 = vmatprep.subr.mxu0 0.0
  %68 = vmatpush1.msra.mxu0 0.0
  %69 = vmatprep.subr.mxu0 0.0
  %70 = vmatpush1.msra.mxu0 0.0
  %71 = vmatprep.subr.mxu0 0.0
  %72 = vmatpush1.msra.mxu0 0.0
  %73 = vmatprep.subr.mxu0 0.0
  %74 = vmatpush1.msra.mxu0 0.0
  %75 = vmatprep.subr.mxu0 0.0
  %76 = vmatpush1.msra.mxu0 0.0
  %77 = vmatprep.subr.mxu0 0.0
  %78 = vmatpush1.msra.mxu0 0.0
  %79 = vmatprep.subr.mxu0 0.0
  %80 = vmatpush1.msra.mxu0 0.0
  %81 = vmatprep.subr.mxu0 0.0
  %82 = vmatpush1.msra.mxu0 0.0
  %83 = vmatprep.subr.mxu0 0.0
  %84 = vmatpush1.msra.mxu0 0.0
  %85 = vmatprep.subr.mxu0 0.0
  %86 = vmatpush1.msra.mxu0 0.0
  %87 = vmatprep.subr.mxu0 0.0
  %88 = vmatpush1.msra.mxu0 0.0
  %89 = vmatprep.subr.mxu0 0.0
  %90 = vmatpush1.msra.mxu0 0.0
  %91 = vmatprep.subr.mxu0 0.0
  %92 = vmatpush1.msra.mxu0 0.0
  %93 = vmatprep.subr.mxu0 0.0
  %94 = vmatpush1.msra.mxu0 0.0
  %95 = vmatprep.subr.mxu0 0.0
  %96 = vmatpush1.msra.mxu0 0.0
  %97 = vmatprep.subr.mxu0 0.0
  %98 = vmatpush1.msra.mxu0 0.0
  %99 = vmatprep.subr.mxu0 0.0
  %100 = vmatpush1.msra.mxu0 0.0
  %101 = vmatprep.subr.mxu0 0.0
  %102 = vmatpush1.msra.mxu0 0.0
  %103 = vmatprep.subr.mxu0 0.0
  %104 = vmatpush1.msra.mxu0 0.0
  %105 = vmatprep.subr.mxu0 0.0
  %106 = vmatpush1.msra.mxu0 0.0
  %107 = vmatprep.subr.mxu0 0.0
  %108 = vmatpush1.msra.mxu0 0.0
  %109 = vmatprep.subr.mxu0 0.0
  %110 = vmatpush1.msra.mxu0 0.0
  %111 = vmatprep.subr.mxu0 0.0
  %112 = vmatpush1.msra.mxu0 0.0
  %113 = vmatprep.subr.mxu0 0.0
  %114 = vmatpush1.msra.mxu0 0.0
  %115 = vmatprep.subr.mxu0 0.0
  %116 = vmatpush1.msra.mxu0 0.0
  %117 = vmatprep.subr.mxu0 0.0
  %118 = vmatpush1.msra.mxu0 0.0
  %119 = vmatprep.subr.mxu0 0.0
  %120 = vmatpush1.msra.mxu0 0.0
  %121 = vmatprep.subr.mxu0 0.0
  %122 = vmatpush1.msra.mxu0 0.0
  %123 = vmatprep.mubr.f32.mxu0 0.0
  %124 = vmatmul.mubr.f32.gmra.mrb[0].mxu0 %v36
  %v125 = vpop.f32.mrb[0].mxu0
  %v126 = vadd.f32 %v32, %v125
  %v127 = vpop.f32.mrb[0].mxu0
  %128 = vmatprep.mubr.f32.mxu0 0.0
  %129 = vmatmul.mubr.f32.gmra.mrb[0].mxu0 %v39
  %v130 = vpop.f32.mrb[0].mxu0
  %v131 = vadd.f32 %v32, %v130
  %v132 = vpop.f32.mrb[0].mxu0
  %133 = vmatprep.mubr.f32.mxu0 0.0
  %134 = vmatmul.mubr.f32.gmra.mrb[0].mxu0 %v42
  %v135 = vpop.f32.mrb[0].mxu0
  %v136 = vadd.f32 %v32, %v135
  %v137 = vpop.f32.mrb[0].mxu0
  %138 = vmatprep.mubr.f32.mxu0 0.0
  %139 = vmatmul.mubr.f32.gmra.mrb[0].mxu0 %v45
  %v140 = vpop.f32.mrb[0].mxu0
  %v141 = vadd.f32 %v32, %v140
  %v142 = vpop.f32.mrb[0].mxu0
  %143 = vmatprep.mubr.f32.mxu0 0.0
  %144 = vmatmul.mubr.f32.gmra.mrb[0].mxu0 %v48
  %v145 = vpop.f32.mrb[0].mxu0
  %v146 = vadd.f32 %v32, %v145
  %v147 = vpop.f32.mrb[0].mxu0
  %148 = vmatprep.mubr.f32.mxu0 0.0
  %149 = vmatmul.mubr.f32.gmra.mrb[0].mxu0 %v51
  %v150 = vpop.f32.mrb[0].mxu0
  %v151 = vadd.f32 %v32, %v150
  %v152 = vpop.f32.mrb[0].mxu0
  %153 = vmatprep.mubr.f32.mxu0 0.0
  %154 = vmatmul.mubr.f32.gmra.mrb[0].mxu0 %v54
  %v155 = vpop.f32.mrb[0].mxu0
  %v156 = vadd.f32 %v32, %v155
  %v157 = vpop.f32.mrb[0].mxu0
  %158 = vmatprep.mubr.f32.mxu0 0.0
  %159 = vmatmul.mubr.f32.gmra.mrb[0].mxu0 %v57
  %v160 = vpop.f32.mrb[0].mxu0
  %v161 = vadd.f32 %v32, %v160
  %v162 = vpop.f32.mrb[0].mxu0
  %163 = vdwg.mxu0
  %v164 = vld [vmem:[%s3] sm:$0xff]
  %v165 = vld [vmem:[%s3 + $0x8] sm:$0xff]
  %v166 = vld [vmem:[%s3 + $0x10] sm:$0xff]
  %v167 = vld [vmem:[%s3 + $0x18] sm:$0xff]
  %v168 = vld [vmem:[%s3 + $0x20] sm:$0xff]
  %v169 = vld [vmem:[%s3 + $0x28] sm:$0xff]
  %v170 = vld [vmem:[%s3 + $0x30] sm:$0xff]
  %v171 = vld [vmem:[%s3 + $0x38] sm:$0xff]
  %180 = vrot.lane.b32.xlu0 %v126, 120
  %v181 = vpop.permute.xlu0 %180
  %182 = vrot.lane.b32.xlu0 %v131, 120
  %v183 = vpop.permute.xlu0 %182
  %184 = vrot.lane.b32.xlu0 %v136, 120
  %v185 = vpop.permute.xlu0 %184
  %186 = vrot.lane.b32.xlu0 %v141, 120
  %v187 = vpop.permute.xlu0 %186
  %188 = vrot.lane.b32.xlu0 %v146, 120
  %v189 = vpop.permute.xlu0 %188
  %190 = vrot.lane.b32.xlu0 %v151, 120
  %v191 = vpop.permute.xlu0 %190
  %192 = vrot.lane.b32.xlu0 %v156, 120
  %v193 = vpop.permute.xlu0 %192
  %194 = vrot.lane.b32.xlu0 %v161, 120
  %v195 = vpop.permute.xlu0 %194
  %vm196 = vcmask 64512
  %v197 = vsel %vm196, %v126, 0
  %v199 = vsel %vm196, %v131, 0
  %v201 = vsel %vm196, %v136, 0
  %v203 = vsel %vm196, %v141, 0
  %v205 = vsel %vm196, %v146, 0
  %v207 = vsel %vm196, %v151, 0
  %v209 = vsel %vm196, %v156, 0
  %v211 = vsel %vm196, %v161, 0
  %v213 = vsel %vm196, %v181, 0
  %v215 = vsel %vm196, %v183, 0
  %v217 = vsel %vm196, %v185, 0
  %v219 = vsel %vm196, %v187, 0
  %v221 = vsel %vm196, %v189, 0
  %v223 = vsel %vm196, %v191, 0
  %v225 = vsel %vm196, %v193, 0
  %v227 = vsel %vm196, %v195, 0
  %229 = vmatprep.subr.mxu0 0.0
  %230 = vmatpush1.xpose.msra.mxu0 %v213
  %231 = vmatprep.subr.mxu0 0.0
  %232 = vmatpush1.xpose.msra.mxu0 %v215
  %233 = vmatprep.subr.mxu0 0.0
  %234 = vmatpush1.xpose.msra.mxu0 %v217
  %235 = vmatprep.subr.mxu0 0.0
  %236 = vmatpush1.xpose.msra.mxu0 %v219
  %237 = vmatprep.subr.mxu0 0.0
  %238 = vmatpush1.xpose.msra.mxu0 %v221
  %239 = vmatprep.subr.mxu0 0.0
  %240 = vmatpush1.xpose.msra.mxu0 %v223
  %241 = vmatprep.subr.mxu0 0.0
  %242 = vmatpush1.xpose.msra.mxu0 %v225
  %243 = vmatprep.subr.mxu0 0.0
  %244 = vmatpush1.xpose.msra.mxu0 %v227
  %245 = vmatprep.subr.mxu0 0.0
  %246 = vmatpush1.xpose.msra.mxu0 0.0
  %247 = vmatprep.subr.mxu0 0.0
  %248 = vmatpush1.xpose.msra.mxu0 0.0
  %249 = vmatprep.subr.mxu0 0.0
  %250 = vmatpush1.xpose.msra.mxu0 0.0
  %251 = vmatprep.subr.mxu0 0.0
  %252 = vmatpush1.xpose.msra.mxu0 0.0
  %253 = vmatprep.subr.mxu0 0.0
  %254 = vmatpush1.xpose.msra.mxu0 0.0
  %255 = vmatprep.subr.mxu0 0.0
  %256 = vmatpush1.xpose.msra.mxu0 0.0
  %257 = vmatprep.subr.mxu0 0.0
  %258 = vmatpush1.xpose.msra.mxu0 0.0
  %259 = vmatprep.subr.mxu0 0.0
  %260 = vmatpush1.xpose.msra.mxu0 0.0
  %261 = vmatprep.subr.mxu0 0.0
  %262 = vmatpush1.xpose.msra.mxu0 0.0
  %263 = vmatprep.subr.mxu0 0.0
  %264 = vmatpush1.xpose.msra.mxu0 0.0
  %265 = vmatprep.subr.mxu0 0.0
  %266 = vmatpush1.xpose.msra.mxu0 0.0
  %267 = vmatprep.subr.mxu0 0.0
  %268 = vmatpush1.xpose.msra.mxu0 0.0
  %269 = vmatprep.subr.mxu0 0.0
  %270 = vmatpush1.xpose.msra.mxu0 0.0
  %271 = vmatprep.subr.mxu0 0.0
  %272 = vmatpush1.xpose.msra.mxu0 0.0
  %273 = vmatprep.subr.mxu0 0.0
  %274 = vmatpush1.xpose.msra.mxu0 0.0
  %275 = vmatprep.subr.mxu0 0.0
  %276 = vmatpush1.xpose.msra.mxu0 0.0
  %277 = vmatprep.subr.mxu0 0.0
  %278 = vmatpush1.xpose.msra.mxu0 0.0
  %279 = vmatprep.subr.mxu0 0.0
  %280 = vmatpush1.xpose.msra.mxu0 0.0
  %281 = vmatprep.subr.mxu0 0.0
  %282 = vmatpush1.xpose.msra.mxu0 0.0
  %283 = vmatprep.subr.mxu0 0.0
  %284 = vmatpush1.xpose.msra.mxu0 0.0
  %285 = vmatprep.subr.mxu0 0.0
  %286 = vmatpush1.xpose.msra.mxu0 0.0
  %287 = vmatprep.subr.mxu0 0.0
  %288 = vmatpush1.xpose.msra.mxu0 0.0
  %289 = vmatprep.subr.mxu0 0.0
  %290 = vmatpush1.xpose.msra.mxu0 0.0
  %291 = vmatprep.subr.mxu0 0.0
  %292 = vmatpush1.xpose.msra.mxu0 0.0
  %293 = vmatprep.mubr.f32.mxu0 0.0
  %294 = vmatmul.mubr.f32.gmra.mrb[0].mxu0 %v197
  %v295 = vpop.f32.mrb[0].mxu0
  %v296 = vadd.f32 %v164, %v295
  %v297 = vpop.f32.mrb[0].mxu0
  %298 = vmatprep.mubr.f32.mxu0 0.0
  %299 = vmatmul.mubr.f32.gmra.mrb[0].mxu0 %v199
  %v300 = vpop.f32.mrb[0].mxu0
  %v301 = vadd.f32 %v165, %v300
  %v302 = vpop.f32.mrb[0].mxu0
  %303 = vmatprep.mubr.f32.mxu0 0.0
  %304 = vmatmul.mubr.f32.gmra.mrb[0].mxu0 %v201
  %v305 = vpop.f32.mrb[0].mxu0
  %v306 = vadd.f32 %v166, %v305
  %v307 = vpop.f32.mrb[0].mxu0
  %308 = vmatprep.mubr.f32.mxu0 0.0
  %309 = vmatmul.mubr.f32.gmra.mrb[0].mxu0 %v203
  %v310 = vpop.f32.mrb[0].mxu0
  %v311 = vadd.f32 %v167, %v310
  %v312 = vpop.f32.mrb[0].mxu0
  %313 = vmatprep.mubr.f32.mxu0 0.0
  %314 = vmatmul.mubr.f32.gmra.mrb[0].mxu0 %v205
  %v315 = vpop.f32.mrb[0].mxu0
  %v316 = vadd.f32 %v168, %v315
  %v317 = vpop.f32.mrb[0].mxu0
  %318 = vmatprep.mubr.f32.mxu0 0.0
  %319 = vmatmul.mubr.f32.gmra.mrb[0].mxu0 %v207
  %v320 = vpop.f32.mrb[0].mxu0
  %v321 = vadd.f32 %v169, %v320
  %v322 = vpop.f32.mrb[0].mxu0
  %323 = vmatprep.mubr.f32.mxu0 0.0
  %324 = vmatmul.mubr.f32.gmra.mrb[0].mxu0 %v209
  %v325 = vpop.f32.mrb[0].mxu0
  %v326 = vadd.f32 %v170, %v325
  %v327 = vpop.f32.mrb[0].mxu0
  %328 = vmatprep.mubr.f32.mxu0 0.0
  %329 = vmatmul.mubr.f32.gmra.mrb[0].mxu0 %v211
  %v330 = vpop.f32.mrb[0].mxu0
  %v331 = vadd.f32 %v171, %v330
  %v332 = vpop.f32.mrb[0].mxu0
  %333 = vdwg.mxu0
  %vm334 = vcmask 523264
  %v335 = vsel %vm334, %v296, -inf
  %336 = vmax.xlane.f32.xlu0 %v335
  %v337 = vpop.xlane.xlu0 %336
  %v338 = vsel %vm334, %v301, -inf
  %339 = vmax.xlane.f32.xlu0 %v338
  %v340 = vpop.xlane.xlu0 %339
  %v341 = vsel %vm334, %v306, -inf
  %342 = vmax.xlane.f32.xlu0 %v341
  %v343 = vpop.xlane.xlu0 %342
  %v344 = vsel %vm334, %v311, -inf
  %345 = vmax.xlane.f32.xlu0 %v344
  %v346 = vpop.xlane.xlu0 %345
  %v347 = vsel %vm334, %v316, -inf
  %348 = vmax.xlane.f32.xlu0 %v347
  %v349 = vpop.xlane.xlu0 %348
  %v350 = vsel %vm334, %v321, -inf
  %351 = vmax.xlane.f32.xlu0 %v350
  %v352 = vpop.xlane.xlu0 %351
  %v353 = vsel %vm334, %v326, -inf
  %354 = vmax.xlane.f32.xlu0 %v353
  %v355 = vpop.xlane.xlu0 %354
  %v356 = vsel %vm334, %v331, -inf
  %357 = vmax.xlane.f32.xlu0 %v356
  %v358 = vpop.xlane.xlu0 %357
  %v359 = vsub.f32 %v296, %v337
  %v360 = vsub.f32 %v301, %v340
  %v361 = vsub.f32 %v306, %v343
  %v362 = vsub.f32 %v311, %v346
  %v363 = vsub.f32 %v316, %v349
  %v364 = vsub.f32 %v321, %v352
  %v365 = vsub.f32 %v326, %v355
  %v366 = vsub.f32 %v331, %v358
  %v367 = vmul.f32 %v359, 1.442695
  %v368 = vpow.pop %v367
  %v369 = vmul.f32 %v360, 1.442695
  %v370 = vpow.pop %v369
  %v371 = vmul.f32 %v361, 1.442695
  %v372 = vpow.pop %v371
  %v373 = vmul.f32 %v362, 1.442695
  %v374 = vpow.pop %v373
  %v375 = vmul.f32 %v363, 1.442695
  %v376 = vpow.pop %v375
  %v377 = vmul.f32 %v364, 1.442695
  %v378 = vpow.pop %v377
  %v379 = vmul.f32 %v365, 1.442695
  %v380 = vpow.pop %v379
  %v381 = vmul.f32 %v366, 1.442695
  %v382 = vpow.pop %v381
  %v383 = vsel %vm334, %v368, 0.0
  %384 = vadd.xlane.f32.xlu0 %v383
  %v385 = vpop.xlane.xlu0 %384
  %v386 = vsel %vm334, %v370, 0.0
  %387 = vadd.xlane.f32.xlu0 %v386
  %v388 = vpop.xlane.xlu0 %387
  %v389 = vsel %vm334, %v372, 0.0
  %390 = vadd.xlane.f32.xlu0 %v389
  %v391 = vpop.xlane.xlu0 %390
  %v392 = vsel %vm334, %v374, 0.0
  %393 = vadd.xlane.f32.xlu0 %v392
  %v394 = vpop.xlane.xlu0 %393
  %v395 = vsel %vm334, %v376, 0.0
  %396 = vadd.xlane.f32.xlu0 %v395
  %v397 = vpop.xlane.xlu0 %396
  %v398 = vsel %vm334, %v378, 0.0
  %399 = vadd.xlane.f32.xlu0 %v398
  %v400 = vpop.xlane.xlu0 %399
  %v401 = vsel %vm334, %v380, 0.0
  %402 = vadd.xlane.f32.xlu0 %v401
  %v403 = vpop.xlane.xlu0 %402
  %v404 = vsel %vm334, %v382, 0.0
  %405 = vadd.xlane.f32.xlu0 %v404
  %v406 = vpop.xlane.xlu0 %405
  %v407 = vrcp.pop %v385
  %v408 = vrcp.pop %v388
  %v409 = vrcp.pop %v391
  %v410 = vrcp.pop %v394
  %v411 = vrcp.pop %v397
  %v412 = vrcp.pop %v400
  %v413 = vrcp.pop %v403
  %v414 = vrcp.pop %v406
  %v415 = vmul.f32 %v385, %v407
  %v416 = vmul.f32 %v388, %v408
  %v417 = vmul.f32 %v391, %v409
  %v418 = vmul.f32 %v394, %v410
  %v419 = vmul.f32 %v397, %v411
  %v420 = vmul.f32 %v400, %v412
  %v421 = vmul.f32 %v403, %v413
  %v422 = vmul.f32 %v406, %v414
  %v423 = vsub.f32 2.0, %v415
  %v424 = vsub.f32 2.0, %v416
  %v425 = vsub.f32 2.0, %v417
  %v426 = vsub.f32 2.0, %v418
  %v427 = vsub.f32 2.0, %v419
  %v428 = vsub.f32 2.0, %v420
  %v429 = vsub.f32 2.0, %v421
  %v430 = vsub.f32 2.0, %v422
  %v431 = vmul.f32 %v407, %v423
  %v432 = vmul.f32 %v408, %v424
  %v433 = vmul.f32 %v409, %v425
  %v434 = vmul.f32 %v410, %v426
  %v435 = vmul.f32 %v411, %v427
  %v436 = vmul.f32 %v412, %v428
  %v437 = vmul.f32 %v413, %v429
  %v438 = vmul.f32 %v414, %v430
  %v439 = vmul.f32 %v385, %v431
  %v440 = vmul.f32 %v388, %v432
  %v441 = vmul.f32 %v391, %v433
  %v442 = vmul.f32 %v394, %v434
  %v443 = vmul.f32 %v397, %v435
  %v444 = vmul.f32 %v400, %v436
  %v445 = vmul.f32 %v403, %v437
  %v446 = vmul.f32 %v406, %v438
  %v447 = vsub.f32 2.0, %v439
  %v448 = vsub.f32 2.0, %v440
  %v449 = vsub.f32 2.0, %v441
  %v450 = vsub.f32 2.0, %v442
  %v451 = vsub.f32 2.0, %v443
  %v452 = vsub.f32 2.0, %v444
  %v453 = vsub.f32 2.0, %v445
  %v454 = vsub.f32 2.0, %v446
  %v455 = vmul.f32 %v431, %v447
  %v456 = vmul.f32 %v432, %v448
  %v457 = vmul.f32 %v433, %v449
  %v458 = vmul.f32 %v434, %v450
  %v459 = vmul.f32 %v435, %v451
  %v460 = vmul.f32 %v436, %v452
  %v461 = vmul.f32 %v437, %v453
  %v462 = vmul.f32 %v438, %v454
  %v463 = vmul.f32 %v368, %v455
  %v464 = vmul.f32 %v370, %v456
  %v465 = vmul.f32 %v372, %v457
  %v466 = vmul.f32 %v374, %v458
  %v467 = vmul.f32 %v376, %v459
  %v468 = vmul.f32 %v378, %v460
  %v469 = vmul.f32 %v380, %v461
  %v470 = vmul.f32 %v382, %v462
  %471 = vrot.lane.b32.xlu0 %v126, 112
  %v472 = vpop.permute.xlu0 %471
  %473 = vrot.lane.b32.xlu0 %v131, 112
  %v474 = vpop.permute.xlu0 %473
  %475 = vrot.lane.b32.xlu0 %v136, 112
  %v476 = vpop.permute.xlu0 %475
  %477 = vrot.lane.b32.xlu0 %v141, 112
  %v478 = vpop.permute.xlu0 %477
  %479 = vrot.lane.b32.xlu0 %v146, 112
  %v480 = vpop.permute.xlu0 %479
  %481 = vrot.lane.b32.xlu0 %v151, 112
  %v482 = vpop.permute.xlu0 %481
  %483 = vrot.lane.b32.xlu0 %v156, 112
  %v484 = vpop.permute.xlu0 %483
  %485 = vrot.lane.b32.xlu0 %v161, 112
  %v486 = vpop.permute.xlu0 %485
  %v496 = vsel %vm334, %v463, 0
  %v499 = vsel %vm334, %v464, 0
  %v502 = vsel %vm334, %v465, 0
  %v505 = vsel %vm334, %v466, 0
  %v508 = vsel %vm334, %v467, 0
  %v511 = vsel %vm334, %v468, 0
  %v514 = vsel %vm334, %v469, 0
  %v517 = vsel %vm334, %v470, 0
  %519 = vmatprep.subr.mxu0 0.0
  %520 = vmatpush1.msra.mxu0 %v472
  %521 = vmatprep.subr.mxu0 0.0
  %522 = vmatpush1.msra.mxu0 %v474
  %523 = vmatprep.subr.mxu0 0.0
  %524 = vmatpush1.msra.mxu0 %v476
  %525 = vmatprep.subr.mxu0 0.0
  %526 = vmatpush1.msra.mxu0 %v478
  %527 = vmatprep.subr.mxu0 0.0
  %528 = vmatpush1.msra.mxu0 %v480
  %529 = vmatprep.subr.mxu0 0.0
  %530 = vmatpush1.msra.mxu0 %v482
  %531 = vmatprep.subr.mxu0 0.0
  %532 = vmatpush1.msra.mxu0 %v484
  %533 = vmatprep.subr.mxu0 0.0
  %534 = vmatpush1.msra.mxu0 %v486
  %535 = vmatprep.subr.mxu0 0.0
  %536 = vmatpush1.msra.mxu0 0.0
  %537 = vmatprep.subr.mxu0 0.0
  %538 = vmatpush1.msra.mxu0 0.0
  %539 = vmatprep.subr.mxu0 0.0
  %540 = vmatpush1.msra.mxu0 0.0
  %541 = vmatprep.subr.mxu0 0.0
  %542 = vmatpush1.msra.mxu0 0.0
  %543 = vmatprep.subr.mxu0 0.0
  %544 = vmatpush1.msra.mxu0 0.0
  %545 = vmatprep.subr.mxu0 0.0
  %546 = vmatpush1.msra.mxu0 0.0
  %547 = vmatprep.subr.mxu0 0.0
  %548 = vmatpush1.msra.mxu0 0.0
  %549 = vmatprep.subr.mxu0 0.0
  %550 = vmatpush1.msra.mxu0 0.0
  %551 = vmatprep.subr.mxu0 0.0
  %552 = vmatpush1.msra.mxu0 0.0
  %553 = vmatprep.subr.mxu0 0.0
  %554 = vmatpush1.msra.mxu0 0.0
  %555 = vmatprep.subr.mxu0 0.0
  %556 = vmatpush1.msra.mxu0 0.0
  %557 = vmatprep.subr.mxu0 0.0
  %558 = vmatpush1.msra.mxu0 0.0
  %559 = vmatprep.subr.mxu0 0.0
  %560 = vmatpush1.msra.mxu0 0.0
  %561 = vmatprep.subr.mxu0 0.0
  %562 = vmatpush1.msra.mxu0 0.0
  %563 = vmatprep.subr.mxu0 0.0
  %564 = vmatpush1.msra.mxu0 0.0
  %565 = vmatprep.subr.mxu0 0.0
  %566 = vmatpush1.msra.mxu0 0.0
  %567 = vmatprep.subr.mxu0 0.0
  %568 = vmatpush1.msra.mxu0 0.0
  %569 = vmatprep.subr.mxu0 0.0
  %570 = vmatpush1.msra.mxu0 0.0
  %571 = vmatprep.subr.mxu0 0.0
  %572 = vmatpush1.msra.mxu0 0.0
  %573 = vmatprep.subr.mxu0 0.0
  %574 = vmatpush1.msra.mxu0 0.0
  %575 = vmatprep.subr.mxu0 0.0
  %576 = vmatpush1.msra.mxu0 0.0
  %577 = vmatprep.subr.mxu0 0.0
  %578 = vmatpush1.msra.mxu0 0.0
  %579 = vmatprep.subr.mxu0 0.0
  %580 = vmatpush1.msra.mxu0 0.0
  %581 = vmatprep.subr.mxu0 0.0
  %582 = vmatpush1.msra.mxu0 0.0
  %583 = vmatprep.mubr.f32.mxu0 0.0
  %584 = vmatmul.mubr.f32.gmra.mrb[0].mxu0 %v496
  %v585 = vpop.f32.mrb[0].mxu0
  %v586 = vadd.f32 0.0, %v585
  %v587 = vpop.f32.mrb[0].mxu0
  %588 = vmatprep.mubr.f32.mxu0 0.0
  %589 = vmatmul.mubr.f32.gmra.mrb[0].mxu0 %v499
  %v590 = vpop.f32.mrb[0].mxu0
  %v591 = vadd.f32 0.0, %v590
  %v592 = vpop.f32.mrb[0].mxu0
  %593 = vmatprep.mubr.f32.mxu0 0.0
  %594 = vmatmul.mubr.f32.gmra.mrb[0].mxu0 %v502
  %v595 = vpop.f32.mrb[0].mxu0
  %v596 = vadd.f32 0.0, %v595
  %v597 = vpop.f32.mrb[0].mxu0
  %598 = vmatprep.mubr.f32.mxu0 0.0
  %599 = vmatmul.mubr.f32.gmra.mrb[0].mxu0 %v505
  %v600 = vpop.f32.mrb[0].mxu0
  %v601 = vadd.f32 0.0, %v600
  %v602 = vpop.f32.mrb[0].mxu0
  %603 = vmatprep.mubr.f32.mxu0 0.0
  %604 = vmatmul.mubr.f32.gmra.mrb[0].mxu0 %v508
  %v605 = vpop.f32.mrb[0].mxu0
  %v606 = vadd.f32 0.0, %v605
  %v607 = vpop.f32.mrb[0].mxu0
  %608 = vmatprep.mubr.f32.mxu0 0.0
  %609 = vmatmul.mubr.f32.gmra.mrb[0].mxu0 %v511
  %v610 = vpop.f32.mrb[0].mxu0
  %v611 = vadd.f32 0.0, %v610
  %v612 = vpop.f32.mrb[0].mxu0
  %613 = vmatprep.mubr.f32.mxu0 0.0
  %614 = vmatmul.mubr.f32.gmra.mrb[0].mxu0 %v514
  %v615 = vpop.f32.mrb[0].mxu0
  %v616 = vadd.f32 0.0, %v615
  %v617 = vpop.f32.mrb[0].mxu0
  %618 = vmatprep.mubr.f32.mxu0 0.0
  %619 = vmatmul.mubr.f32.gmra.mrb[0].mxu0 %v517
  %v620 = vpop.f32.mrb[0].mxu0
  %v621 = vadd.f32 0.0, %v620
  %v622 = vpop.f32.mrb[0].mxu0
  %623 = vdwg.mxu0
  %624 = vst.msk [vmem:[%s4] sm:$0xff] %vm196, %v586
  %625 = vst.msk [vmem:[%s4 + $0x8] sm:$0xff] %vm196, %v591
  %626 = vst.msk [vmem:[%s4 + $0x10] sm:$0xff] %vm196, %v596
  %627 = vst.msk [vmem:[%s4 + $0x18] sm:$0xff] %vm196, %v601
  %628 = vst.msk [vmem:[%s4 + $0x20] sm:$0xff] %vm196, %v606
  %629 = vst.msk [vmem:[%s4 + $0x28] sm:$0xff] %vm196, %v611
  %630 = vst.msk [vmem:[%s4 + $0x30] sm:$0xff] %vm196, %v616
  %631 = vst.msk [vmem:[%s4 + $0x38] sm:$0xff] %vm196, %v621
  // Predicated region
  $region18: #{tpu_custom_call.1} parent=0 // pred_check
    _
  $region19: #{tpu_custom_call.1} parent=0 // pred_check_branch
    %633 = sbr.rel (0) target = $region21
  $region20: #{tpu_custom_call.1} parent=0 // pred_region
    _
  $region21: #{tpu_custom_call.1} parent=0 // pred_fallthru
    _
  // Predicated region
  $region22: #{tpu_custom_call.1} parent=0 // pred_check
    _
  $region23: #{tpu_custom_call.1} parent=0 // pred_check_branch
    %635 = sbr.rel (0) target = $region25
  $region24: #{tpu_custom_call.1} parent=0 // pred_region
    _
  $region25: #{tpu_custom_call.1} parent=0 // pred_fallthru
    _

</llo_original>
